<compile_context>
chip_gen: v7x
topology: tpu7x:2x2x1
jax: 0.10.0
libtpu: 0.0.40
codegen_flags: <defaults>
</compile_context>

<pallas_src>
import functools

import jax
import jax.numpy as jnp
from jax.experimental import pallas as pl
from jax.experimental.pallas import tpu as pltpu


# ----------------------------------------------------------------------------
# In-kernel exact GELU (erf via the Eigen/XLA f32 rational approximation)
# ----------------------------------------------------------------------------
def _erf_f32(x):
    # generic_fast_erf_float: erf(x) ~= x*P(x^2)/Q(x^2), |x| clamped to 4.
    w = jnp.clip(x, -4.0, 4.0)
    s = w * w
    p = jnp.float32(-2.72614225801306e-10)
    p = p * s + jnp.float32(2.77068142495902e-08)
    p = p * s + jnp.float32(-2.10102402082508e-06)
    p = p * s + jnp.float32(-5.69250639462346e-05)
    p = p * s + jnp.float32(-7.34990630326855e-04)
    p = p * s + jnp.float32(-2.95459980854025e-03)
    p = p * s + jnp.float32(-1.60960333262415e-02)
    p = p * w
    q = jnp.float32(-1.45660718464996e-05)
    q = q * s + jnp.float32(-2.13374055278905e-04)
    q = q * s + jnp.float32(-1.68282697438203e-03)
    q = q * s + jnp.float32(-7.37332916720468e-03)
    q = q * s + jnp.float32(-1.42647390514189e-02)
    # Divide -> EUP reciprocal (separate bundle slot, ~free) + one Newton
    # refinement step to recover full f32 accuracy of the rational approx.
    r = pl.reciprocal(q, approx=True)
    r = r * (jnp.float32(2.0) - q * r)
    return p * r


def _gelu_exact(x):
    # PyTorch nn.GELU() default: 0.5 * x * (1 + erf(x / sqrt(2)))
    return 0.5 * x * (1.0 + _erf_f32(x * jnp.float32(0.7071067811865476)))


# ----------------------------------------------------------------------------
# Fused MLP kernel: y = GELU(x @ W1 + b1) @ W2 + b2   (one M-row tile per step)
# ----------------------------------------------------------------------------
def embed_fc_kernel(x_ref, w1_ref, b1_ref, w2_ref, b2_ref, o_ref, *, mxu_dtype):
    x = x_ref[...]                                     # (tm, input_dim)
    w1 = w1_ref[...]
    if mxu_dtype is not None:                          # optional bf16 MXU path
        x = x.astype(mxu_dtype)
        w1 = w1.astype(mxu_dtype)
    h = jnp.dot(x, w1, preferred_element_type=jnp.float32) + b1_ref[...]
    h = _gelu_exact(h)                                 # (tm, emb_dim) in f32

    w2 = w2_ref[...]
    if mxu_dtype is not None:
        h = h.astype(mxu_dtype)
        w2 = w2.astype(mxu_dtype)
    y = jnp.dot(h, w2, preferred_element_type=jnp.float32) + b2_ref[...]
    o_ref[...] = y.astype(o_ref.dtype)                 # lane-dense (tm, 128)


# ----------------------------------------------------------------------------
# M-tile selection: amortize per-step overhead, keep >=2 blocks for v7x's 2 TCs
# ----------------------------------------------------------------------------
def _choose_block_m(m, target_block_m):
    if m <= 256:
        return m                                   # single grid step
    half = -(-m // 2)                              # ensure grid_m >= 2
    half = ((half + 127) // 128) * 128             # sublane/MXU-friendly rows
    # Cap at 2048: double-buffered (tm,160) f32 tiles stay << VMEM on all
    # generations (incl. v7x's 64 MiB / v5e's 16 MiB scoped default).
    # Pushing block_m higher would need pltpu.CompilerParams(vmem_limit_bytes=...).
    return max(128, min(target_block_m, half, 2048))


# ----------------------------------------------------------------------------
# Wrapper: x.view(-1, input_dim) + fused Pallas MLP (no pad, no output slice)
# ----------------------------------------------------------------------------
def embed_fc_forward(x, w1, b1, w2, b2, *, block_m=1024, mxu_dtype=None):
    # w1: (input_dim, emb_dim), w2: (emb_dim, emb_dim)  (transpose of PyTorch's
    # (out, in) storage, so the kernel never transposes).
    input_dim, emb_dim = w1.shape
    x2d = x.reshape(-1, input_dim)                 # == x.view(-1, input_dim)
    m = x2d.shape[0]

    tm = _choose_block_m(m, block_m)
    grid_m = -(-m // tm)                           # ragged last block is masked

    b1_2d = b1.reshape(1, emb_dim)
    b2_2d = b2.reshape(1, emb_dim)

    kernel = functools.partial(embed_fc_kernel, mxu_dtype=mxu_dtype)

    return pl.pallas_call(
        kernel,
        out_shape=jax.ShapeDtypeStruct((m, emb_dim), x.dtype),
        grid=(grid_m,),
        in_specs=[
            pl.BlockSpec((tm, input_dim), lambda i: (i, 0)),
            pl.BlockSpec((input_dim, emb_dim), lambda i: (0, 0)),
            pl.BlockSpec((1, emb_dim), lambda i: (0, 0)),
            pl.BlockSpec((emb_dim, emb_dim), lambda i: (0, 0)),
            pl.BlockSpec((1, emb_dim), lambda i: (0, 0)),
        ],
        out_specs=pl.BlockSpec((tm, emb_dim), lambda i: (i, 0)),
        compiler_params=pltpu.CompilerParams(
            dimension_semantics=("parallel",)),
    )(x2d, w1, b1_2d, w2, b2_2d)


# ----------------------------------------------------------------------------
# Deterministic parameter init (mirrors torch.nn.Linear default init bounds)
# ----------------------------------------------------------------------------
def linear_init(key, fan_in, fan_out):
    kw, kb = jax.random.split(key)
    bound = 1.0 / jnp.sqrt(fan_in)
    # Stored as (in, out), i.e. the transpose of PyTorch's (out, in) weight.
    w = jax.random.uniform(kw, (fan_in, fan_out), jnp.float32, -bound, bound)
    b = jax.random.uniform(kb, (fan_out,), jnp.float32, -bound, bound)
    return w, b


def _reference(x, w1, b1, w2, b2):
    x2d = x.reshape(-1, w1.shape[0])
    h = jnp.dot(x2d, w1, precision=jax.lax.Precision.HIGHEST) + b1
    h = jax.nn.gelu(h, approximate=False)
    return jnp.dot(h, w2, precision=jax.lax.Precision.HIGHEST) + b2


if __name__ == "__main__":
    input_dim = 32
    emb_dim = 128

    key = jax.random.PRNGKey(0)
    k1, k2, kx, kx2 = jax.random.split(key, 4)
    w1, b1 = linear_init(k1, input_dim, emb_dim)
    w2, b2 = linear_init(k2, emb_dim, emb_dim)

    # Small case: (batch=2, seq=8, hidden=32) -> view(-1, 32) -> (16, 32)
    x = jax.random.normal(kx, (2, 8, input_dim), jnp.float32)
    out = jax.block_until_ready(embed_fc_forward(x, w1, b1, w2, b2))
    ref = jax.block_until_ready(_reference(x, w1, b1, w2, b2))
    assert out.shape == (16, emb_dim)
    assert jnp.allclose(out, ref, atol=2e-3, rtol=2e-3)

    # Ragged multi-block case (m=300, grid_m=2): exercises the no-pad path and
    # the masked last output block.
    x_big = jax.random.normal(kx2, (3, 100, input_dim), jnp.float32)
    out_big = jax.block_until_ready(embed_fc_forward(x_big, w1, b1, w2, b2))
    ref_big = jax.block_until_ready(_reference(x_big, w1, b1, w2, b2))
    assert out_big.shape == (300, emb_dim)
    assert jnp.allclose(out_big, ref_big, atol=2e-3, rtol=2e-3)

    print("KERNEL_OK")
</pallas_src>

<mosaic_0001>
module attributes {stable_mosaic.version = 11 : i64} {
  func.func @embed_fc_kernel(%arg0: i32, %arg1: memref<16x32xf32, #tpu.memory_space<vmem>>, %arg2: memref<32x128xf32, #tpu.memory_space<vmem>>, %arg3: memref<1x128xf32, #tpu.memory_space<vmem>>, %arg4: memref<128x128xf32, #tpu.memory_space<vmem>>, %arg5: memref<1x128xf32, #tpu.memory_space<vmem>>, %arg6: memref<16x128xf32, #tpu.memory_space<vmem>>) attributes {dimension_semantics = [#tpu.dimension_semantics<parallel>], iteration_bounds = array<i64: 1>, scalar_prefetch = 0 : i64, scratch_operands = 0 : i64, tpu.core_type = #tpu.core_type<tc>, window_params = [{transform_indices = @transform_0, window_bounds = array<i64: 16, 32>}, {pipeline_mode = #tpu.pipeline_mode<synchronous>, transform_indices = @transform_1, window_bounds = array<i64: 32, 128>}, {pipeline_mode = #tpu.pipeline_mode<synchronous>, transform_indices = @transform_2, window_bounds = array<i64: 1, 128>}, {pipeline_mode = #tpu.pipeline_mode<synchronous>, transform_indices = @transform_3, window_bounds = array<i64: 128, 128>}, {pipeline_mode = #tpu.pipeline_mode<synchronous>, transform_indices = @transform_4, window_bounds = array<i64: 1, 128>}, {transform_indices = @transform_5, window_bounds = array<i64: 16, 128>}]} {
    %c0 = arith.constant 0 : index
    %c0_0 = arith.constant 0 : index
    %0 = vector.load %arg1[%c0, %c0_0] : memref<16x32xf32, #tpu.memory_space<vmem>>, vector<16x32xf32>
    %c0_1 = arith.constant 0 : index
    %c0_2 = arith.constant 0 : index
    %1 = vector.load %arg2[%c0_1, %c0_2] : memref<32x128xf32, #tpu.memory_space<vmem>>, vector<32x128xf32>
    %cst = arith.constant dense<0.000000e+00> : vector<16x128xf32>
    %2 = tpu.matmul %0, %1, %cst {dimension_numbers = #tpu.dot_dimension_numbers<[1], [0], [0], [1], [0, 0, 1, 1], [], []>} : vector<16x32xf32>, vector<32x128xf32>, vector<16x128xf32> -> vector<16x128xf32>
    %c0_3 = arith.constant 0 : index
    %c0_4 = arith.constant 0 : index
    %3 = vector.load %arg3[%c0_3, %c0_4] : memref<1x128xf32, #tpu.memory_space<vmem>>, vector<1x128xf32>
    %4 = vector.broadcast %3 : vector<1x128xf32> to vector<16x128xf32>
    %5 = arith.addf %2, %4 : vector<16x128xf32>
    %cst_5 = arith.constant 5.000000e-01 : f32
    %6 = vector.broadcast %cst_5 : f32 to vector<16x128xf32>
    %7 = arith.mulf %6, %5 : vector<16x128xf32>
    %cst_6 = arith.constant 0.707106769 : f32
    %8 = vector.broadcast %cst_6 : f32 to vector<16x128xf32>
    %9 = arith.mulf %5, %8 : vector<16x128xf32>
    %cst_7 = arith.constant -4.000000e+00 : f32
    %cst_8 = arith.constant 4.000000e+00 : f32
    %10 = vector.broadcast %cst_7 : f32 to vector<16x128xf32>
    %11 = arith.maximumf %10, %9 : vector<16x128xf32>
    %12 = vector.broadcast %cst_8 : f32 to vector<16x128xf32>
    %13 = arith.minimumf %12, %11 : vector<16x128xf32>
    %14 = arith.mulf %13, %13 : vector<16x128xf32>
    %cst_9 = arith.constant -2.72614237E-10 : f32
    %15 = vector.broadcast %cst_9 : f32 to vector<16x128xf32>
    %16 = arith.mulf %15, %14 : vector<16x128xf32>
    %cst_10 = arith.constant 2.77068146E-8 : f32
    %17 = vector.broadcast %cst_10 : f32 to vector<16x128xf32>
    %18 = arith.addf %16, %17 : vector<16x128xf32>
    %19 = arith.mulf %18, %14 : vector<16x128xf32>
    %cst_11 = arith.constant -2.10102394E-6 : f32
    %20 = vector.broadcast %cst_11 : f32 to vector<16x128xf32>
    %21 = arith.addf %19, %20 : vector<16x128xf32>
    %22 = arith.mulf %21, %14 : vector<16x128xf32>
    %cst_12 = arith.constant -5.69250624E-5 : f32
    %23 = vector.broadcast %cst_12 : f32 to vector<16x128xf32>
    %24 = arith.addf %22, %23 : vector<16x128xf32>
    %25 = arith.mulf %24, %14 : vector<16x128xf32>
    %cst_13 = arith.constant -7.34990637E-4 : f32
    %26 = vector.broadcast %cst_13 : f32 to vector<16x128xf32>
    %27 = arith.addf %25, %26 : vector<16x128xf32>
    %28 = arith.mulf %27, %14 : vector<16x128xf32>
    %cst_14 = arith.constant -2.954600e-03 : f32
    %29 = vector.broadcast %cst_14 : f32 to vector<16x128xf32>
    %30 = arith.addf %28, %29 : vector<16x128xf32>
    %31 = arith.mulf %30, %14 : vector<16x128xf32>
    %cst_15 = arith.constant -0.0160960332 : f32
    %32 = vector.broadcast %cst_15 : f32 to vector<16x128xf32>
    %33 = arith.addf %31, %32 : vector<16x128xf32>
    %34 = arith.mulf %33, %13 : vector<16x128xf32>
    %cst_16 = arith.constant -1.45660715E-5 : f32
    %35 = vector.broadcast %cst_16 : f32 to vector<16x128xf32>
    %36 = arith.mulf %35, %14 : vector<16x128xf32>
    %cst_17 = arith.constant -2.13374049E-4 : f32
    %37 = vector.broadcast %cst_17 : f32 to vector<16x128xf32>
    %38 = arith.addf %36, %37 : vector<16x128xf32>
    %39 = arith.mulf %38, %14 : vector<16x128xf32>
    %cst_18 = arith.constant -0.00168282702 : f32
    %40 = vector.broadcast %cst_18 : f32 to vector<16x128xf32>
    %41 = arith.addf %39, %40 : vector<16x128xf32>
    %42 = arith.mulf %41, %14 : vector<16x128xf32>
    %cst_19 = arith.constant -0.00737332925 : f32
    %43 = vector.broadcast %cst_19 : f32 to vector<16x128xf32>
    %44 = arith.addf %42, %43 : vector<16x128xf32>
    %45 = arith.mulf %44, %14 : vector<16x128xf32>
    %cst_20 = arith.constant -0.0142647391 : f32
    %46 = vector.broadcast %cst_20 : f32 to vector<16x128xf32>
    %47 = arith.addf %45, %46 : vector<16x128xf32>
    %48 = tpu.reciprocal %47 {approx = true} : vector<16x128xf32> -> vector<16x128xf32>
    %49 = arith.mulf %47, %48 : vector<16x128xf32>
    %cst_21 = arith.constant 2.000000e+00 : f32
    %50 = vector.broadcast %cst_21 : f32 to vector<16x128xf32>
    %51 = arith.subf %50, %49 : vector<16x128xf32>
    %52 = arith.mulf %48, %51 : vector<16x128xf32>
    %53 = arith.mulf %34, %52 : vector<16x128xf32>
    %cst_22 = arith.constant 1.000000e+00 : f32
    %54 = vector.broadcast %cst_22 : f32 to vector<16x128xf32>
    %55 = arith.addf %54, %53 : vector<16x128xf32>
    %56 = arith.mulf %7, %55 : vector<16x128xf32>
    %c0_23 = arith.constant 0 : index
    %c0_24 = arith.constant 0 : index
    %57 = vector.load %arg4[%c0_23, %c0_24] : memref<128x128xf32, #tpu.memory_space<vmem>>, vector<128x128xf32>
    %cst_25 = arith.constant dense<0.000000e+00> : vector<16x128xf32>
    %58 = tpu.matmul %56, %57, %cst_25 {dimension_numbers = #tpu.dot_dimension_numbers<[1], [0], [0], [1], [0, 0, 1, 1], [], []>} : vector<16x128xf32>, vector<128x128xf32>, vector<16x128xf32> -> vector<16x128xf32>
    %c0_26 = arith.constant 0 : index
    %c0_27 = arith.constant 0 : index
    %59 = vector.load %arg5[%c0_26, %c0_27] : memref<1x128xf32, #tpu.memory_space<vmem>>, vector<1x128xf32>
    %60 = vector.broadcast %59 : vector<1x128xf32> to vector<16x128xf32>
    %61 = arith.addf %58, %60 : vector<16x128xf32>
    %c0_28 = arith.constant 0 : index
    %c0_29 = arith.constant 0 : index
    %62 = vector.load %arg6[%c0_28, %c0_29] : memref<16x128xf32, #tpu.memory_space<vmem>>, vector<16x128xf32>
    tpu.vector_store %arg6[%c0_28, %c0_29], %61 {strides = array<i32>} : memref<16x128xf32, #tpu.memory_space<vmem>>, vector<16x128xf32>,
    return
  }
  func.func @transform_0(%arg0: i32) -> (i32, i32) {
    %c0_i32 = arith.constant 0 : i32
    %c0_i32_0 = arith.constant 0 : i32
    return %arg0, %c0_i32 : i32, i32
  }
  func.func @transform_1(%arg0: i32) -> (i32, i32) {
    %c0_i32 = arith.constant 0 : i32
    %c0_i32_0 = arith.constant 0 : i32
    %c0_i32_1 = arith.constant 0 : i32
    return %c0_i32, %c0_i32_0 : i32, i32
  }
  func.func @transform_2(%arg0: i32) -> (i32, i32) {
    %c0_i32 = arith.constant 0 : i32
    %c0_i32_0 = arith.constant 0 : i32
    %c0_i32_1 = arith.constant 0 : i32
    return %c0_i32, %c0_i32_0 : i32, i32
  }
  func.func @transform_3(%arg0: i32) -> (i32, i32) {
    %c0_i32 = arith.constant 0 : i32
    %c0_i32_0 = arith.constant 0 : i32
    %c0_i32_1 = arith.constant 0 : i32
    return %c0_i32, %c0_i32_0 : i32, i32
  }
  func.func @transform_4(%arg0: i32) -> (i32, i32) {
    %c0_i32 = arith.constant 0 : i32
    %c0_i32_0 = arith.constant 0 : i32
    %c0_i32_1 = arith.constant 0 : i32
    return %c0_i32, %c0_i32_0 : i32, i32
  }
  func.func @transform_5(%arg0: i32) -> (i32, i32) {
    %c0_i32 = arith.constant 0 : i32
    %c0_i32_0 = arith.constant 0 : i32
    return %arg0, %c0_i32 : i32, i32
  }
}

</mosaic_0001>

<llo_original>
// kernel: tpu_custom_call.1
$region0: #{tpu_custom_call.1}
  #allocation0 [shape = 'u32[]', space=smem, size = 0x4, offset = 0x4, fixed_abs, tag = 'smem constant byte address 0x4 - core index']
  #allocation1 [shape = 'u32[144,128]{1,0:T(1,128)}', space=vmem, size = 0x12000, scoped, tag = 'internal scratch']
  %s0 = inlined_call_operand.hbm [shape: f32[16,32], index: 0, kind: input, shape index: {}]
  %s1 = inlined_call_operand.hbm [shape: f32[32,128], index: 1, kind: input, shape index: {}]
  %s2 = inlined_call_operand.vmem [shape: f32[1,128], index: 2, kind: input, shape index: {}]
  %s3 = inlined_call_operand.hbm [shape: f32[128,128], index: 3, kind: input, shape index: {}]
  %s4 = inlined_call_operand.vmem [shape: f32[1,128], index: 4, kind: input, shape index: {}]
  %s5 = inlined_call_operand.hbm [shape: f32[16,128], index: 5, kind: output, shape index: {}]
  %s6 = sld [smem:[#allocation0]]
  $region42: #{tpu_custom_call.1} parent=0
    _
  %s8 = ssub.s32 1, %s6
  %s9 = scalar_select 0, %s8, %s6
  $region1: #{tpu_custom_call.1} parent=0
    #allocation2 [shape = 'u8[8192]{0}', space=vmem, size = 0x2000, scoped, tag = 'input window, operand 0, single buffered']
    #allocation3 [shape = 's32[1]{0}', space=sflag, size = 0x4, scoped, tag = 'scoped memory for tpu_custom_call.1']
    #allocation4 [shape = 's32[1]{0}', space=sflag, size = 0x4, scoped, tag = 'scoped memory for tpu_custom_call.1']
    #allocation5 [shape = 'u8[16384]{0}', space=vmem, size = 0x4000, scoped, tag = 'input window, operand 1, single buffered']
    #allocation6 [shape = 's32[1]{0}', space=sflag, size = 0x4, scoped, tag = 'scoped memory for tpu_custom_call.1']
    #allocation7 [shape = 'u8[65536]{0}', space=vmem, size = 0x10000, scoped, tag = 'input window, operand 3, single buffered']
    #allocation8 [shape = 'u8[8192]{0}', space=vmem, size = 0x2000, scoped, tag = 'output window, operand 0, single buffered']
    %10 = vsyncpa [#allocation3], 0
    %11 = vsyncpa [#allocation6], 0
    %12 = vsyncpa [#allocation4], 0
    // Predicated region
    $region2: #{tpu_custom_call.1} parent=1 // pred_check
      _
    $region3: #{tpu_custom_call.1} parent=1 // pred_check_branch
      %14 = sbr.rel (0) target = $region5
    $region4: #{tpu_custom_call.1} parent=1 // pred_region
      %s16 = ssub.s32 256, 256
      %17 = vsyncadd [#allocation3], %s16
      %s18 = sshll.u32 [#allocation2], 4
      %s19 = int_to_ptr.vmem [resolvable:$true] %s18
      %24 = dma.hbm_to_vmem [thread:$0]  %s0, 256, %s19, [#allocation3], 128, 128, 8
    $region5: #{tpu_custom_call.1} parent=1 // pred_fallthru
      _
    // Predicated region
    $region6: #{tpu_custom_call.1} parent=1 // pred_check
      _
    $region7: #{tpu_custom_call.1} parent=1 // pred_check_branch
      %26 = sbr.rel (0) target = $region9
    $region8: #{tpu_custom_call.1} parent=1 // pred_region
      %s28 = ssub.s32 512, 512
      %29 = vsyncadd [#allocation6], %s28
      %s30 = sshll.u32 [#allocation5], 4
      %s31 = int_to_ptr.vmem [resolvable:$true] %s30
      %36 = dma.hbm_to_vmem [thread:$0]  %s1, 512, %s31, [#allocation6], 128, 128, 8
    $region9: #{tpu_custom_call.1} parent=1 // pred_fallthru
      _
    // Predicated region
    $region10: #{tpu_custom_call.1} parent=1 // pred_check
      _
    $region11: #{tpu_custom_call.1} parent=1 // pred_check_branch
      %38 = sbr.rel (0) target = $region13
    $region12: #{tpu_custom_call.1} parent=1 // pred_region
      _
    $region13: #{tpu_custom_call.1} parent=1 // pred_fallthru
      _
    // Predicated region
    $region14: #{tpu_custom_call.1} parent=1 // pred_check
      _
    $region15: #{tpu_custom_call.1} parent=1 // pred_check_branch
      %40 = sbr.rel (0) target = $region17
    $region16: #{tpu_custom_call.1} parent=1 // pred_region
      %s42 = ssub.s32 2048, 2048
      %43 = vsyncadd [#allocation6], %s42
      %s44 = sshll.u32 [#allocation7], 4
      %s45 = int_to_ptr.vmem [resolvable:$true] %s44
      %50 = dma.hbm_to_vmem [thread:$0]  %s3, 2048, %s45, [#allocation6], 128, 128, 8
    $region17: #{tpu_custom_call.1} parent=1 // pred_fallthru
      _
    // Predicated region
    $region18: #{tpu_custom_call.1} parent=1 // pred_check
      _
    $region19: #{tpu_custom_call.1} parent=1 // pred_check_branch
      %52 = sbr.rel (0) target = $region21
    $region20: #{tpu_custom_call.1} parent=1 // pred_region
      _
    $region21: #{tpu_custom_call.1} parent=1 // pred_fallthru
      _
    // Predicated region
    $region22: #{tpu_custom_call.1} parent=1 // pred_check
      _
    $region23: #{tpu_custom_call.1} parent=1 // pred_check_branch
      %54 = sbr.rel (0) target = $region25
    $region24: #{tpu_custom_call.1} parent=1 // pred_region
      %55 = dma.done [#allocation3], 256
    $region25: #{tpu_custom_call.1} parent=1 // pred_fallthru
      _
    // Predicated region
    $region26: #{tpu_custom_call.1} parent=1 // pred_check
      _
    $region27: #{tpu_custom_call.1} parent=1 // pred_check_branch
      %57 = sbr.rel (0) target = $region29
    $region28: #{tpu_custom_call.1} parent=1 // pred_region
      %58 = dma.done [#allocation6], 512
    $region29: #{tpu_custom_call.1} parent=1 // pred_fallthru
      _
    // Predicated region
    $region30: #{tpu_custom_call.1} parent=1 // pred_check
      _
    $region31: #{tpu_custom_call.1} parent=1 // pred_check_branch
      %60 = sbr.rel (0) target = $region33
    $region32: #{tpu_custom_call.1} parent=1 // pred_region
      %61 = dma.done [#allocation6], 2048
    $region33: #{tpu_custom_call.1} parent=1 // pred_fallthru
      _
    %v62 = vld [vmem:[#allocation2] sm:$0xff]
    %v63 = vld [vmem:[#allocation2 + $0x8] sm:$0xff]
    %v64 = vld [vmem:[#allocation5] sm:$0xff]
    %v65 = vld [vmem:[#allocation5 + $0x8] sm:$0xff]
    %v66 = vld [vmem:[#allocation5 + $0x10] sm:$0xff]
    %v67 = vld [vmem:[#allocation5 + $0x18] sm:$0xff]
    %v68 = vld [vmem:[%s2] sm:$0x1]
    %v70 = vlaneseq
    %v71 = vshrl.u32 %v70, 7
    %v72 = vsub.s32 0, %v71
    %v73 = vrot.slane %v68, %v72
    %vm75 = vcmask 261120
    %v77 = vsel %vm75, %v62, 0
    %v80 = vsel %vm75, %v63, 0
    %82 = vmatprep.subr.mxu0 0.0
    %83 = vmatpush1.msra.mxu0 %v64
    %84 = vmatprep.subr.mxu0 0.0
    %85 = vmatpush1.msra.mxu0 %v65
    %86 = vmatprep.subr.mxu0 0.0
    %87 = vmatpush1.msra.mxu0 %v66
    %88 = vmatprep.subr.mxu0 0.0
    %89 = vmatpush1.msra.mxu0 %v67
    %90 = vmatprep.subr.mxu0 0.0
    %91 = vmatpush1.msra.mxu0 0.0
    %92 = vmatprep.subr.mxu0 0.0
    %93 = vmatpush1.msra.mxu0 0.0
    %94 = vmatprep.subr.mxu0 0.0
    %95 = vmatpush1.msra.mxu0 0.0
    %96 = vmatprep.subr.mxu0 0.0
    %97 = vmatpush1.msra.mxu0 0.0
    %98 = vmatprep.subr.mxu0 0.0
    %99 = vmatpush1.msra.mxu0 0.0
    %100 = vmatprep.subr.mxu0 0.0
    %101 = vmatpush1.msra.mxu0 0.0
    %102 = vmatprep.subr.mxu0 0.0
    %103 = vmatpush1.msra.mxu0 0.0
    %104 = vmatprep.subr.mxu0 0.0
    %105 = vmatpush1.msra.mxu0 0.0
    %106 = vmatprep.subr.mxu0 0.0
    %107 = vmatpush1.msra.mxu0 0.0
    %108 = vmatprep.subr.mxu0 0.0
    %109 = vmatpush1.msra.mxu0 0.0
    %110 = vmatprep.subr.mxu0 0.0
    %111 = vmatpush1.msra.mxu0 0.0
    %112 = vmatprep.subr.mxu0 0.0
    %113 = vmatpush1.msra.mxu0 0.0
    %114 = vmatprep.subr.mxu0 0.0
    %115 = vmatpush1.msra.mxu0 0.0
    %116 = vmatprep.subr.mxu0 0.0
    %117 = vmatpush1.msra.mxu0 0.0
    %118 = vmatprep.subr.mxu0 0.0
    %119 = vmatpush1.msra.mxu0 0.0
    %120 = vmatprep.subr.mxu0 0.0
    %121 = vmatpush1.msra.mxu0 0.0
    %122 = vmatprep.subr.mxu0 0.0
    %123 = vmatpush1.msra.mxu0 0.0
    %124 = vmatprep.subr.mxu0 0.0
    %125 = vmatpush1.msra.mxu0 0.0
    %126 = vmatprep.subr.mxu0 0.0
    %127 = vmatpush1.msra.mxu0 0.0
    %128 = vmatprep.subr.mxu0 0.0
    %129 = vmatpush1.msra.mxu0 0.0
    %130 = vmatprep.subr.mxu0 0.0
    %131 = vmatpush1.msra.mxu0 0.0
    %132 = vmatprep.subr.mxu0 0.0
    %133 = vmatpush1.msra.mxu0 0.0
    %134 = vmatprep.subr.mxu0 0.0
    %135 = vmatpush1.msra.mxu0 0.0
    %136 = vmatprep.subr.mxu0 0.0
    %137 = vmatpush1.msra.mxu0 0.0
    %138 = vmatprep.subr.mxu0 0.0
    %139 = vmatpush1.msra.mxu0 0.0
    %140 = vmatprep.subr.mxu0 0.0
    %141 = vmatpush1.msra.mxu0 0.0
    %142 = vmatprep.subr.mxu0 0.0
    %143 = vmatpush1.msra.mxu0 0.0
    %144 = vmatprep.subr.mxu0 0.0
    %145 = vmatpush1.msra.mxu0 0.0
    %146 = vmatprep.mubr.f32.mxu0 0.0
    %147 = vmatmul.mubr.f32.gmra.mrb[0].mxu0 %v77
    %v148 = vpop.f32.mrb[0].mxu0
    %v149 = vadd.f32 %v73, %v148
    %v150 = vpop.f32.mrb[0].mxu0
    %151 = vmatprep.mubr.f32.mxu0 0.0
    %152 = vmatmul.mubr.f32.gmra.mrb[0].mxu0 %v80
    %v153 = vpop.f32.mrb[0].mxu0
    %v154 = vadd.f32 %v73, %v153
    %v155 = vpop.f32.mrb[0].mxu0
    %156 = vdwg.mxu0
    %v157 = vmul.f32 %v149, 0.5
    %v158 = vmul.f32 %v154, 0.5
    %v159 = vmul.f32 %v149, 0.70710677
    %v160 = vmul.f32 %v154, 0.70710677
    %v161 = vmax.f32 %v159, -4.0
    %v162 = vmax.f32 %v160, -4.0
    %v163 = vmin.f32 %v161, 4.0
    %v164 = vmin.f32 %v162, 4.0
    %v165 = vmul.f32 %v163, %v163
    %v166 = vmul.f32 %v164, %v164
    %v167 = vmul.f32 %v165, -2.7261424e-10
    %v168 = vmul.f32 %v166, -2.7261424e-10
    %v169 = vadd.f32 %v167, 2.7706815e-08
    %v170 = vadd.f32 %v168, 2.7706815e-08
    %v171 = vmul.f32 %v169, %v165
    %v172 = vmul.f32 %v170, %v166
    %v173 = vadd.f32 %v171, -2.101024e-06
    %v174 = vadd.f32 %v172, -2.101024e-06
    %v175 = vmul.f32 %v173, %v165
    %v176 = vmul.f32 %v174, %v166
    %v177 = vadd.f32 %v175, -5.6925062e-05
    %v178 = vadd.f32 %v176, -5.6925062e-05
    %v179 = vmul.f32 %v177, %v165
    %v180 = vmul.f32 %v178, %v166
    %v181 = vadd.f32 %v179, -0.00073499064
    %v182 = vadd.f32 %v180, -0.00073499064
    %v183 = vmul.f32 %v181, %v165
    %v184 = vmul.f32 %v182, %v166
    %v185 = vadd.f32 %v183, -0.0029546
    %v186 = vadd.f32 %v184, -0.0029546
    %v187 = vmul.f32 %v185, %v165
    %v188 = vmul.f32 %v186, %v166
    %v189 = vadd.f32 %v187, -0.016096033
    %v190 = vadd.f32 %v188, -0.016096033
    %v191 = vmul.f32 %v189, %v163
    %v192 = vmul.f32 %v190, %v164
    %v193 = vmul.f32 %v165, -1.45660715e-05
    %v194 = vmul.f32 %v166, -1.45660715e-05
    %v195 = vadd.f32 %v193, -0.00021337405
    %v196 = vadd.f32 %v194, -0.00021337405
    %v197 = vmul.f32 %v195, %v165
    %v198 = vmul.f32 %v196, %v166
    %v199 = vadd.f32 %v197, -0.001682827
    %v200 = vadd.f32 %v198, -0.001682827
    %v201 = vmul.f32 %v199, %v165
    %v202 = vmul.f32 %v200, %v166
    %v203 = vadd.f32 %v201, -0.0073733293
    %v204 = vadd.f32 %v202, -0.0073733293
    %v205 = vmul.f32 %v203, %v165
    %v206 = vmul.f32 %v204, %v166
    %v207 = vadd.f32 %v205, -0.014264739
    %v208 = vadd.f32 %v206, -0.014264739
    %v209 = vrcp.pop %v207
    %v210 = vrcp.pop %v208
    %v211 = vmul.f32 %v207, %v209
    %v212 = vmul.f32 %v208, %v210
    %v213 = vsub.f32 2.0, %v211
    %v214 = vsub.f32 2.0, %v212
    %v215 = vmul.f32 %v209, %v213
    %v216 = vmul.f32 %v210, %v214
    %v217 = vmul.f32 %v191, %v215
    %v218 = vmul.f32 %v192, %v216
    %v219 = vadd.f32 %v217, 1.0
    %v220 = vadd.f32 %v218, 1.0
    %v221 = vmul.f32 %v157, %v219
    %v222 = vmul.f32 %v158, %v220
    %v223 = vld [vmem:[#allocation7] sm:$0xff]
    %v224 = vld [vmem:[#allocation7 + $0x8] sm:$0xff]
    %v225 = vld [vmem:[#allocation7 + $0x10] sm:$0xff]
    %v226 = vld [vmem:[#allocation7 + $0x18] sm:$0xff]
    %v227 = vld [vmem:[#allocation7 + $0x20] sm:$0xff]
    %v228 = vld [vmem:[#allocation7 + $0x28] sm:$0xff]
    %v229 = vld [vmem:[#allocation7 + $0x30] sm:$0xff]
    %v230 = vld [vmem:[#allocation7 + $0x38] sm:$0xff]
    %v231 = vld [vmem:[#allocation7 + $0x40] sm:$0xff]
    %v232 = vld [vmem:[#allocation7 + $0x48] sm:$0xff]
    %v233 = vld [vmem:[#allocation7 + $0x50] sm:$0xff]
    %v234 = vld [vmem:[#allocation7 + $0x58] sm:$0xff]
    %v235 = vld [vmem:[#allocation7 + $0x60] sm:$0xff]
    %v236 = vld [vmem:[#allocation7 + $0x68] sm:$0xff]
    %v237 = vld [vmem:[#allocation7 + $0x70] sm:$0xff]
    %v238 = vld [vmem:[#allocation7 + $0x78] sm:$0xff]
    %v239 = vld [vmem:[%s4] sm:$0x1]
    %v241 = vlaneseq
    %v242 = vshrl.u32 %v241, 7
    %v243 = vsub.s32 0, %v242
    %v244 = vrot.slane %v239, %v243
    %246 = vmatprep.subr.mxu0 0.0
    %247 = vmatpush1.msra.mxu0 %v223
    %248 = vmatprep.subr.mxu0 0.0
    %249 = vmatpush1.msra.mxu0 %v224
    %250 = vmatprep.subr.mxu0 0.0
    %251 = vmatpush1.msra.mxu0 %v225
    %252 = vmatprep.subr.mxu0 0.0
    %253 = vmatpush1.msra.mxu0 %v226
    %254 = vmatprep.subr.mxu0 0.0
    %255 = vmatpush1.msra.mxu0 %v227
    %256 = vmatprep.subr.mxu0 0.0
    %257 = vmatpush1.msra.mxu0 %v228
    %258 = vmatprep.subr.mxu0 0.0
    %259 = vmatpush1.msra.mxu0 %v229
    %260 = vmatprep.subr.mxu0 0.0
    %261 = vmatpush1.msra.mxu0 %v230
    %262 = vmatprep.subr.mxu0 0.0
    %263 = vmatpush1.msra.mxu0 %v231
    %264 = vmatprep.subr.mxu0 0.0
    %265 = vmatpush1.msra.mxu0 %v232
    %266 = vmatprep.subr.mxu0 0.0
    %267 = vmatpush1.msra.mxu0 %v233
    %268 = vmatprep.subr.mxu0 0.0
    %269 = vmatpush1.msra.mxu0 %v234
    %270 = vmatprep.subr.mxu0 0.0
    %271 = vmatpush1.msra.mxu0 %v235
    %272 = vmatprep.subr.mxu0 0.0
    %273 = vmatpush1.msra.mxu0 %v236
    %274 = vmatprep.subr.mxu0 0.0
    %275 = vmatpush1.msra.mxu0 %v237
    %276 = vmatprep.subr.mxu0 0.0
    %277 = vmatpush1.msra.mxu0 %v238
    %278 = vmatprep.subr.mxu0 0.0
    %279 = vmatpush1.msra.mxu0 0.0
    %280 = vmatprep.subr.mxu0 0.0
    %281 = vmatpush1.msra.mxu0 0.0
    %282 = vmatprep.subr.mxu0 0.0
    %283 = vmatpush1.msra.mxu0 0.0
    %284 = vmatprep.subr.mxu0 0.0
    %285 = vmatpush1.msra.mxu0 0.0
    %286 = vmatprep.subr.mxu0 0.0
    %287 = vmatpush1.msra.mxu0 0.0
    %288 = vmatprep.subr.mxu0 0.0
    %289 = vmatpush1.msra.mxu0 0.0
    %290 = vmatprep.subr.mxu0 0.0
    %291 = vmatpush1.msra.mxu0 0.0
    %292 = vmatprep.subr.mxu0 0.0
    %293 = vmatpush1.msra.mxu0 0.0
    %294 = vmatprep.subr.mxu0 0.0
    %295 = vmatpush1.msra.mxu0 0.0
    %296 = vmatprep.subr.mxu0 0.0
    %297 = vmatpush1.msra.mxu0 0.0
    %298 = vmatprep.subr.mxu0 0.0
    %299 = vmatpush1.msra.mxu0 0.0
    %300 = vmatprep.subr.mxu0 0.0
    %301 = vmatpush1.msra.mxu0 0.0
    %302 = vmatprep.subr.mxu0 0.0
    %303 = vmatpush1.msra.mxu0 0.0
    %304 = vmatprep.subr.mxu0 0.0
    %305 = vmatpush1.msra.mxu0 0.0
    %306 = vmatprep.subr.mxu0 0.0
    %307 = vmatpush1.msra.mxu0 0.0
    %308 = vmatprep.subr.mxu0 0.0
    %309 = vmatpush1.msra.mxu0 0.0
    %310 = vmatprep.mubr.f32.mxu0 0.0
    %311 = vmatmul.mubr.f32.gmra.mrb[0].mxu0 %v221
    %v312 = vpop.f32.mrb[0].mxu0
    %v313 = vadd.f32 %v244, %v312
    %v314 = vpop.f32.mrb[0].mxu0
    %315 = vmatprep.mubr.f32.mxu0 0.0
    %316 = vmatmul.mubr.f32.gmra.mrb[0].mxu0 %v222
    %v317 = vpop.f32.mrb[0].mxu0
    %v318 = vadd.f32 %v244, %v317
    %v319 = vpop.f32.mrb[0].mxu0
    %320 = vdwg.mxu0
    %321 = vst [vmem:[#allocation8] sm:$0xff] %v313
    %322 = vst [vmem:[#allocation8 + $0x8] sm:$0xff] %v318
    // Predicated region
    $region34: #{tpu_custom_call.1} parent=1 // pred_check
      _
    $region35: #{tpu_custom_call.1} parent=1 // pred_check_branch
      %324 = sbr.rel (0) target = $region37
    $region36: #{tpu_custom_call.1} parent=1 // pred_region
      %s326 = ssub.s32 256, 256
      %327 = vsyncadd [#allocation4], %s326
      %s328 = sshll.u32 [#allocation8], 4
      %s329 = int_to_ptr.vmem [resolvable:$true] %s328
      %334 = dma.vmem_to_hbm [thread:$0]  %s329, 256, %s5, [#allocation4], 128, 128, 8
    $region37: #{tpu_custom_call.1} parent=1 // pred_fallthru
      _
    // Predicated region
    $region38: #{tpu_custom_call.1} parent=1 // pred_check
      _
    $region39: #{tpu_custom_call.1} parent=1 // pred_check_branch
      %336 = sbr.rel (0) target = $region41
    $region40: #{tpu_custom_call.1} parent=1 // pred_region
      %337 = dma.done [#allocation4], 256
    $region41: #{tpu_custom_call.1} parent=1 // pred_fallthru
      _
    %338 = vsyncpa [#allocation3], 1
    %339 = vsyncpa [#allocation6], 1
    %340 = vsyncpa [#allocation4], 1

</llo_original>
